<compile_context>
chip_gen: v7x
topology: tpu7x:2x2x1
jax: 0.10.0
libtpu: 0.0.40
codegen_flags: <defaults>
</compile_context>

<pallas_src>
import jax
import jax.numpy as jnp
from jax.experimental import pallas as pl
from jax.experimental.pallas import tpu as pltpu

INPUT_SIZE = 5
OUTPUT_SIZE = 1

# Feature rows padded to one f32 sublane group (8); batch lives on the lane axis.
PAD_IN = 8

# Default lanes per batch tile: 8 * 131072 * 4 B = 4 MiB x block (8 MiB double
# buffered) + 2 * 512 KiB out blocks -> ~9 MiB, under the default scoped VMEM on
# v5e (16 MiB), v6e (32 MiB) and v7x (32 MiB), and large enough to amortize the
# ~0.35 us per-grid-step overhead even at v7x's ~3.2 TB/s HBM bandwidth.
DEFAULT_TILE_B = 131072

# Below this many samples, plain XLA matmul beats any pallas_call.
DEFAULT_MIN_PALLAS_BATCH = 8192


def _round_up(x, m):
    return ((x + m - 1) // m) * m


def linear_kernel(x_ref, w_ref, b_ref, o_ref):
    # x_ref: (PAD_IN, TILE_B) VMEM   feature-major input tile
    # w_ref: (PAD_IN, 1)      VMEM   per-feature weight column (rows 5..7 are 0)
    # b_ref: (1,)             SMEM   scalar bias
    # o_ref: (1, TILE_B)      VMEM   lane-dense output row
    #
    # One full-vreg VPU multiply (broadcast of the (8,1) weight column) + an
    # XLU sublane reduction. Zero-padded feature rows contribute nothing
    # because the corresponding weight rows are exactly zero.
    prod = x_ref[...] * w_ref[...]
    o_ref[...] = jnp.sum(prod, axis=0, keepdims=True) + b_ref[0]


def linear_forward(x, weight, bias, tile_b=DEFAULT_TILE_B,
                   min_pallas_batch=DEFAULT_MIN_PALLAS_BATCH):
    """x: (N, 5) f32; weight: (1, 5) f32 (PyTorch layout); bias: (1,) f32 -> (N, 1) f32."""
    x = jnp.asarray(x, jnp.float32)
    weight = jnp.asarray(weight, jnp.float32)
    bias = jnp.asarray(bias, jnp.float32)

    n, in_f = x.shape
    out_f = weight.shape[0]
    assert in_f == INPUT_SIZE and out_f == OUTPUT_SIZE
    assert tile_b % 128 == 0

    # Small-batch fallback: pallas_call fixed overhead dominates at tiny N.
    if n < min_pallas_batch:
        return x @ weight.T + bias

    # Batch tile selection:
    #   * multiple of 128 lanes,
    #   * no larger than `tile_b`,
    #   * clamped so that mid-size batches still produce >= 2 grid steps
    #     (so "parallel" semantics can shard across v7x's two TensorCores).
    if n <= 128:
        tb = 128
    else:
        tb = min(tile_b, _round_up(-(-n // 2), 128))
    n_pad = _round_up(n, tb)
    grid = (n_pad // tb,)

    # Feature-major, zero-padded input: ~32 B read + 4 B written per sample
    # inside the kernel (vs 512 B + 512 B with 128-wide feature padding).
    x_t = jnp.zeros((PAD_IN, n_pad), jnp.float32).at[:in_f, :n].set(x.T)
    # Weight column (8, 1); rows 5..7 MUST stay exactly zero so the padded
    # feature rows and tail batch columns are neutral.
    w_col = jnp.zeros((PAD_IN, 1), jnp.float32).at[:in_f, 0].set(weight[0])

    out_pad = pl.pallas_call(
        linear_kernel,
        out_shape=jax.ShapeDtypeStruct((1, n_pad), jnp.float32),
        grid_spec=pltpu.PrefetchScalarGridSpec(
            num_scalar_prefetch=0,
            grid=grid,
            in_specs=[
                pl.BlockSpec((PAD_IN, tb), lambda i: (0, i)),
                pl.BlockSpec((PAD_IN, 1), lambda i: (0, 0)),            # weights (VMEM)
                pl.BlockSpec(memory_space=pltpu.MemorySpace.SMEM),      # bias
            ],
            out_specs=pl.BlockSpec((1, tb), lambda i: (0, i)),
        ),
        compiler_params=pltpu.CompilerParams(
            # Batch blocks are independent -> shard across TCs on v7x megacore.
            dimension_semantics=("parallel",),
        ),
    )(x_t, w_col, bias)

    # Bias was added to padded tail lanes too; they are discarded by the slice.
    return out_pad[0, :n].reshape(n, OUTPUT_SIZE)


if __name__ == "__main__":
    key = jax.random.PRNGKey(0)
    kx, kw, kb = jax.random.split(key, 3)

    # Deterministic parameter init mimicking nn.Linear's U(-1/sqrt(fan_in), 1/sqrt(fan_in)).
    bound = 1.0 / jnp.sqrt(jnp.float32(INPUT_SIZE))
    weight = jax.random.uniform(kw, (OUTPUT_SIZE, INPUT_SIZE), jnp.float32, -bound, bound)
    bias = jax.random.uniform(kb, (OUTPUT_SIZE,), jnp.float32, -bound, bound)

    # 1) Small synthetic input: 8 samples x 5 features (what `features(tensor)` yields).
    #    Force the Pallas path (min_pallas_batch=0) to validate the kernel itself.
    x = jax.random.normal(kx, (8, INPUT_SIZE), dtype=jnp.float32)
    out = linear_forward(x, weight, bias, min_pallas_batch=0)
    jax.block_until_ready(out)
    ref = x @ weight.T + bias
    assert out.shape == (8, OUTPUT_SIZE)
    assert jnp.allclose(out, ref, atol=1e-5, rtol=1e-5)

    # 2) Multi-block grid (still small): 300 samples, 128-lane tiles -> 3 steps.
    x2 = jax.random.normal(jax.random.PRNGKey(1), (300, INPUT_SIZE), dtype=jnp.float32)
    out2 = linear_forward(x2, weight, bias, tile_b=128, min_pallas_batch=0)
    jax.block_until_ready(out2)
    ref2 = x2 @ weight.T + bias
    assert out2.shape == (300, OUTPUT_SIZE)
    assert jnp.allclose(out2, ref2, atol=1e-5, rtol=1e-5)

    # 3) Mid-size batch with default tile: exercises the >=2-step megacore clamp
    #    (tb rounds cdiv(n,2) up to 128 lanes -> grid of 2).
    x3 = jax.random.normal(jax.random.PRNGKey(2), (1000, INPUT_SIZE), dtype=jnp.float32)
    out3 = linear_forward(x3, weight, bias, min_pallas_batch=0)
    jax.block_until_ready(out3)
    ref3 = x3 @ weight.T + bias
    assert out3.shape == (1000, OUTPUT_SIZE)
    assert jnp.allclose(out3, ref3, atol=1e-5, rtol=1e-5)

    # 4) Small-batch fallback path (default threshold -> plain XLA matmul).
    out4 = linear_forward(x, weight, bias)
    jax.block_until_ready(out4)
    assert out4.shape == (8, OUTPUT_SIZE)
    assert jnp.allclose(out4, ref, atol=1e-5, rtol=1e-5)

    print("KERNEL_OK")
</pallas_src>

<mosaic_0001>
module attributes {stable_mosaic.version = 11 : i64} {
  func.func @linear_kernel(%arg0: i32, %arg1: memref<8x128xf32, #tpu.memory_space<vmem>>, %arg2: memref<8x1xf32, #tpu.memory_space<vmem>>, %arg3: memref<1xf32, #tpu.memory_space<smem>>, %arg4: memref<1x128xf32, #tpu.memory_space<vmem>>) attributes {dimension_semantics = [#tpu.dimension_semantics<parallel>], iteration_bounds = array<i64: 1>, scalar_prefetch = 0 : i64, scratch_operands = 0 : i64, tpu.core_type = #tpu.core_type<tc>, window_params = [{transform_indices = @transform_0, window_bounds = array<i64: 8, 128>}, {pipeline_mode = #tpu.pipeline_mode<synchronous>, transform_indices = @transform_1, window_bounds = array<i64: 8, 1>}, {transform_indices = @transform_2, window_bounds = array<i64: 1>}, {transform_indices = @transform_3, window_bounds = array<i64: 1, 128>}]} {
    %c0 = arith.constant 0 : index
    %c0_0 = arith.constant 0 : index
    %0 = vector.load %arg1[%c0, %c0_0] : memref<8x128xf32, #tpu.memory_space<vmem>>, vector<8x128xf32>
    %c0_1 = arith.constant 0 : index
    %c0_2 = arith.constant 0 : index
    %1 = vector.load %arg2[%c0_1, %c0_2] : memref<8x1xf32, #tpu.memory_space<vmem>>, vector<8x1xf32>
    %2 = vector.broadcast %1 : vector<8x1xf32> to vector<8x128xf32>
    %3 = arith.mulf %0, %2 : vector<8x128xf32>
    %cst = arith.constant dense<0.000000e+00> : vector<128xf32>
    %4 = vector.multi_reduction <add>, %3, %cst [0] : vector<8x128xf32> to vector<128xf32>
    %5 = vector.shape_cast %4 : vector<128xf32> to vector<1x128xf32>
    %c0_3 = arith.constant 0 : index
    %6 = memref.load %arg3[%c0_3] : memref<1xf32, #tpu.memory_space<smem>>
    %7 = vector.broadcast %6 : f32 to vector<1x128xf32>
    %8 = arith.addf %5, %7 : vector<1x128xf32>
    %c0_4 = arith.constant 0 : index
    %c0_5 = arith.constant 0 : index
    %9 = vector.load %arg4[%c0_4, %c0_5] : memref<1x128xf32, #tpu.memory_space<vmem>>, vector<1x128xf32>
    tpu.vector_store %arg4[%c0_4, %c0_5], %8 {strides = array<i32>} : memref<1x128xf32, #tpu.memory_space<vmem>>, vector<1x128xf32>,
    return
  }
  func.func @transform_0(%arg0: i32) -> (i32, i32) {
    %c0_i32 = arith.constant 0 : i32
    %c0_i32_0 = arith.constant 0 : i32
    return %c0_i32, %arg0 : i32, i32
  }
  func.func @transform_1(%arg0: i32) -> (i32, i32) {
    %c0_i32 = arith.constant 0 : i32
    %c0_i32_0 = arith.constant 0 : i32
    %c0_i32_1 = arith.constant 0 : i32
    return %c0_i32, %c0_i32_0 : i32, i32
  }
  func.func @transform_2(%arg0: i32) -> i32 {
    %c0_i32 = arith.constant 0 : i32
    %c0_i32_0 = arith.constant 0 : i32
    return %c0_i32 : i32
  }
  func.func @transform_3(%arg0: i32) -> (i32, i32) {
    %c0_i32 = arith.constant 0 : i32
    %c0_i32_0 = arith.constant 0 : i32
    return %c0_i32, %arg0 : i32, i32
  }
}

</mosaic_0001>

<llo_original>
// kernel: tpu_custom_call.1
$region0: #{tpu_custom_call.1}
  #allocation0 [shape = 'u32[]', space=smem, size = 0x4, offset = 0x4, fixed_abs, tag = 'smem constant byte address 0x4 - core index']
  #allocation1 [shape = 'u32[144,128]{1,0:T(1,128)}', space=vmem, size = 0x12000, scoped, tag = 'internal scratch']
  #allocation2 [shape = 'f32[1]{0:T(128)S(6)}', space=smem, size = 0x200, scoped, tag = 'scoped memory for tpu_custom_call.1']
  %s0 = inlined_call_operand.vmem [shape: f32[8,128], index: 0, kind: input, shape index: {}]
  %s1 = inlined_call_operand.vmem [shape: f32[8,1], index: 1, kind: input, shape index: {}]
  %s2 = inlined_call_operand.<no memory space> [shape: f32[1], index: 2, kind: input, shape index: {}]
  %s3 = inlined_call_operand.hbm [shape: f32[1,128], index: 3, kind: output, shape index: {}]
  %s4 = sld [smem:[#allocation0]]
  $region22: #{tpu_custom_call.1} parent=0
    _
  %s6 = ssub.s32 1, %s4
  %s7 = scalar_select 0, %s6, %s4
  %8 = sst [smem:[#allocation2]] %s2
  $region1: #{tpu_custom_call.1} parent=0
    #allocation3 [shape = 'u8[512]{0}', space=vmem, size = 0x400, scoped, tag = 'output window, operand 0, single buffered']
    #allocation4 [shape = 's32[1]{0}', space=sflag, size = 0x4, scoped, tag = 'scoped memory for tpu_custom_call.1']
    %9 = vsyncpa [#allocation4], 0
    // Predicated region
    $region2: #{tpu_custom_call.1} parent=1 // pred_check
      _
    $region3: #{tpu_custom_call.1} parent=1 // pred_check_branch
      %11 = sbr.rel (0) target = $region5
    $region4: #{tpu_custom_call.1} parent=1 // pred_region
      _
    $region5: #{tpu_custom_call.1} parent=1 // pred_fallthru
      _
    // Predicated region
    $region6: #{tpu_custom_call.1} parent=1 // pred_check
      _
    $region7: #{tpu_custom_call.1} parent=1 // pred_check_branch
      %13 = sbr.rel (0) target = $region9
    $region8: #{tpu_custom_call.1} parent=1 // pred_region
      _
    $region9: #{tpu_custom_call.1} parent=1 // pred_fallthru
      _
    // Predicated region
    $region10: #{tpu_custom_call.1} parent=1 // pred_check
      _
    $region11: #{tpu_custom_call.1} parent=1 // pred_check_branch
      %15 = sbr.rel (0) target = $region13
    $region12: #{tpu_custom_call.1} parent=1 // pred_region
      _
    $region13: #{tpu_custom_call.1} parent=1 // pred_fallthru
      _
    %v16 = vld [vmem:[%s0] sm:$0xff]
    %v17 = vld [vmem:[%s1] sm:$0xff]
    %19 = vset.pattern.permute.xlu0 0
    %20 = vperm.xlu0 %19, %v17
    %v21 = vpop.permute.xlu0 %20
    %v23 = vmul.f32 %v16, %v21
    %v24 = vrot.slane %v23, 4
    %v25 = vadd.f32 %v23, %v24
    %v26 = vrot.slane %v25, 2
    %v27 = vadd.f32 %v25, %v26
    %v28 = vrot.slane %v27, 1
    %v29 = vadd.f32 %v27, %v28
    %s30 = sld [smem:[#allocation2]]
    %v31 = vstv %s30
    %v32 = vadd.f32 %v29, %v31
    %33 = vst [vmem:[#allocation3] sm:$0x1] %v32
    // Predicated region
    $region14: #{tpu_custom_call.1} parent=1 // pred_check
      _
    $region15: #{tpu_custom_call.1} parent=1 // pred_check_branch
      %35 = sbr.rel (0) target = $region17
    $region16: #{tpu_custom_call.1} parent=1 // pred_region
      %s37 = ssub.s32 16, 16
      %38 = vsyncadd [#allocation4], %s37
      %s40 = sshll.u32 [#allocation3], 4
      %s41 = int_to_ptr.vmem [resolvable:$true] %s40
      %43 = dma.vmem_to_hbm [thread:$0]  %s41, 16, %s3, [#allocation4]
    $region17: #{tpu_custom_call.1} parent=1 // pred_fallthru
      _
    // Predicated region
    $region18: #{tpu_custom_call.1} parent=1 // pred_check
      _
    $region19: #{tpu_custom_call.1} parent=1 // pred_check_branch
      %45 = sbr.rel (0) target = $region21
    $region20: #{tpu_custom_call.1} parent=1 // pred_region
      %46 = dma.done [#allocation4], 16
    $region21: #{tpu_custom_call.1} parent=1 // pred_fallthru
      _
    %47 = vsyncpa [#allocation4], 1

</llo_original>
